<compile_context>
chip_gen: v5e
topology: v5e:2x2
jax: 0.10.0
libtpu: 0.0.40
codegen_flags: <defaults>
</compile_context>

<pallas_src>
import jax
import jax.numpy as jnp
from jax.experimental import pallas as pl
from jax.experimental.pallas import tpu as pltpu


def _channel_softmax_kernel(temp_ref, x_ref, o_ref):
    # x_ref: (C, THW) tile. Softmax reduction over axis 0 (channels / sublanes).
    x = x_ref[...]
    m = jnp.max(x, axis=0, keepdims=True)                  # (1, THW) channel max
    e = jnp.exp((x - m).astype(jnp.float32))               # f32 exp on the EUP
    s = jnp.sum(e, axis=0, keepdims=True)                  # (1, THW) f32 denom
    # Fused (exact) divide + temperature scale: one divide on the single
    # denominator row, then one multiply per element. Exact division matches
    # PyTorch's softmax semantics (no approx-reciprocal error).
    scale = temp_ref[0].astype(jnp.float32) / s            # (1, THW)
    o_ref[...] = (e * scale).astype(o_ref.dtype)


def _pick_thw(C, HW, itemsize, budget_bytes):
    """Lane tile width from a VMEM budget for the pipelined block buffers."""
    # Sublane packing unit: f32 -> 8, bf16 -> 16, int8 -> 32. VMEM tiles pad C
    # up to this, so budget against the padded channel count.
    pack = max(8, 32 // itemsize)
    c_pad = ((C + pack - 1) // pack) * pack
    # Pipelined buffers per step: (input block + output block) x 2 double-buffers.
    per_lane_bytes = 2 * c_pad * (itemsize + itemsize)
    thw = (budget_bytes // per_lane_bytes) // 128 * 128
    thw = max(128, thw)
    if thw >= HW:
        # Full-extent last dim: exempt from the 128-multiple rule, single
        # spatial step, no ragged edge.
        return HW
    return thw


def channel_softmax_2d(x, temp, *, vmem_block_budget_bytes=8 << 20):
    """softmax over channel dim (axis=1) of NCHW input, then scale by temp."""
    N, C, H, W = x.shape
    HW = H * W
    x2 = x.reshape(N, C, HW)   # contiguous reshape: no data movement

    THW = _pick_thw(C, HW, x.dtype.itemsize, vmem_block_budget_bytes)
    # Ragged last spatial block is fine: the reduction is strictly per-lane
    # (over channels), so garbage in out-of-bounds lanes never touches valid
    # lanes, and out-of-bounds stores are masked by Pallas.
    grid = (N, pl.cdiv(HW, THW))
    # TODO(synk): for extremely large C (C_pad * 128 * 4 bytes per block already
    # exceeding the budget) a channel-split two-pass softmax would be needed.

    out = pl.pallas_call(
        _channel_softmax_kernel,
        out_shape=jax.ShapeDtypeStruct((N, C, HW), x.dtype),
        grid=grid,
        in_specs=[
            # learnable temperature, shape (1,), lives in SMEM as a scalar
            pl.BlockSpec(memory_space=pltpu.MemorySpace.SMEM),
            pl.BlockSpec((None, C, THW), lambda n, j: (n, 0, j)),
        ],
        out_specs=pl.BlockSpec((None, C, THW), lambda n, j: (n, 0, j)),
        compiler_params=pltpu.CompilerParams(
            dimension_semantics=("parallel", "parallel"),
        ),
    )(temp, x2)

    return out.reshape(N, C, H, W)


if __name__ == "__main__":
    key = jax.random.PRNGKey(0)
    N, C, H, W = 2, 4, 16, 16
    x = jax.random.normal(key, (N, C, H, W), dtype=jnp.float32)

    # matches nn.Parameter(torch.FloatTensor([temp]))
    temp = jnp.array([0.5], dtype=jnp.float32)

    y = channel_softmax_2d(x, temp)
    jax.block_until_ready(y)

    # Reference: exact softmax over channels, scaled by temp.
    ref = jax.nn.softmax(x, axis=1) * temp[0]
    assert y.shape == x.shape and y.dtype == x.dtype
    assert jnp.allclose(y, ref, atol=1e-5, rtol=1e-5), "mismatch vs reference"
    # Per-pixel channel sums should equal temp.
    assert jnp.allclose(jnp.sum(y, axis=1), jnp.full((N, H, W), temp[0]),
                        atol=1e-5), "channel sums != temp"

    print("KERNEL_OK")
</pallas_src>

<mosaic_0001>
module attributes {stable_mosaic.version = 11 : i64} {
  func.func @_channel_softmax_kernel(%arg0: i32, %arg1: i32, %arg2: memref<1xf32, #tpu.memory_space<smem>>, %arg3: memref<1x4x256xf32, #tpu.memory_space<vmem>>, %arg4: memref<1x4x256xf32, #tpu.memory_space<vmem>>) attributes {dimension_semantics = [#tpu.dimension_semantics<parallel>, #tpu.dimension_semantics<parallel>], iteration_bounds = array<i64: 2, 1>, scalar_prefetch = 0 : i64, scratch_operands = 0 : i64, tpu.core_type = #tpu.core_type<tc>, window_params = [{transform_indices = @transform_0, window_bounds = array<i64: 1>}, {transform_indices = @transform_1, window_bounds = array<i64: 1, 4, 256>}, {transform_indices = @transform_2, window_bounds = array<i64: 1, 4, 256>}]} {
    %c0 = arith.constant 0 : index
    %c0_0 = arith.constant 0 : index
    %c0_1 = arith.constant 0 : index
    %0 = vector.load %arg3[%c0, %c0_0, %c0_1] : memref<1x4x256xf32, #tpu.memory_space<vmem>>, vector<1x4x256xf32>
    %1 = vector.shape_cast %0 : vector<1x4x256xf32> to vector<4x256xf32>
    %cst = arith.constant dense<0xFF800000> : vector<256xf32>
    %2 = vector.multi_reduction <maximumf>, %1, %cst [0] : vector<4x256xf32> to vector<256xf32>
    %3 = vector.shape_cast %2 : vector<256xf32> to vector<1x256xf32>
    %4 = vector.broadcast %3 : vector<1x256xf32> to vector<4x256xf32>
    %5 = arith.subf %1, %4 : vector<4x256xf32>
    %6 = math.exp %5 : vector<4x256xf32>
    %cst_2 = arith.constant dense<0.000000e+00> : vector<256xf32>
    %7 = vector.multi_reduction <add>, %6, %cst_2 [0] : vector<4x256xf32> to vector<256xf32>
    %8 = vector.shape_cast %7 : vector<256xf32> to vector<1x256xf32>
    %c0_3 = arith.constant 0 : index
    %9 = memref.load %arg2[%c0_3] : memref<1xf32, #tpu.memory_space<smem>>
    %10 = vector.broadcast %9 : f32 to vector<1x256xf32>
    %11 = arith.divf %10, %8 : vector<1x256xf32>
    %12 = vector.broadcast %11 : vector<1x256xf32> to vector<4x256xf32>
    %13 = arith.mulf %6, %12 : vector<4x256xf32>
    %c0_4 = arith.constant 0 : index
    %c0_5 = arith.constant 0 : index
    %c0_6 = arith.constant 0 : index
    %14 = vector.load %arg4[%c0_4, %c0_5, %c0_6] : memref<1x4x256xf32, #tpu.memory_space<vmem>>, vector<1x4x256xf32>
    %15 = vector.shape_cast %14 : vector<1x4x256xf32> to vector<4x256xf32>
    %16 = vector.shape_cast %13 : vector<4x256xf32> to vector<1x4x256xf32>
    tpu.vector_store %arg4[%c0_4, %c0_5, %c0_6], %16 {strides = array<i32>} : memref<1x4x256xf32, #tpu.memory_space<vmem>>, vector<1x4x256xf32>,
    return
  }
  func.func @transform_0(%arg0: i32, %arg1: i32) -> i32 {
    %c0_i32 = arith.constant 0 : i32
    %c0_i32_0 = arith.constant 0 : i32
    return %c0_i32 : i32
  }
  func.func @transform_1(%arg0: i32, %arg1: i32) -> (i32, i32, i32) {
    %c0_i32 = arith.constant 0 : i32
    %c0_i32_0 = arith.constant 0 : i32
    return %arg0, %c0_i32, %arg1 : i32, i32, i32
  }
  func.func @transform_2(%arg0: i32, %arg1: i32) -> (i32, i32, i32) {
    %c0_i32 = arith.constant 0 : i32
    %c0_i32_0 = arith.constant 0 : i32
    return %arg0, %c0_i32, %arg1 : i32, i32, i32
  }
}

</mosaic_0001>

<llo_original>
// kernel: tpu_custom_call.1
$region0: #{tpu_custom_call.1}
  #allocation0 [shape = 'u32[]', space=smem, size = 0x4, offset = 0x4, fixed_abs, tag = 'smem constant byte address 0x4 - core index']
  #allocation1 [shape = 'u32[72,128]{1,0:T(1,128)}', space=vmem, size = 0x9000, scoped, tag = 'internal scratch']
  #allocation2 [shape = 'f32[1]{0:T(128)S(6)}', space=smem, size = 0x200, scoped, tag = 'scoped memory for tpu_custom_call.1']
  %s0 = inlined_call_operand.<no memory space> [shape: f32[1], index: 0, kind: input, shape index: {}]
  %s1 = inlined_call_operand.hbm [shape: f32[2,4,256], index: 1, kind: input, shape index: {}]
  %s2 = inlined_call_operand.hbm [shape: f32[2,4,256], index: 2, kind: output, shape index: {}]
  %s3 = sld [smem:[#allocation0]]
  $region45: #{tpu_custom_call.1} parent=0
    _
  %s5 = ssub.s32 1, %s3
  %s6 = scalar_select 0, %s5, %s3
  %7 = sst [smem:[#allocation2]] %s0
  $region1: #{tpu_custom_call.1} parent=0
    #allocation3 [shape = 'u8[8192]{0}', space=vmem, size = 0x2000, scoped, tag = 'input window, operand 1']
    #allocation4 [shape = 's32[2]{0}', space=sflag, size = 0x8, scoped, tag = 'scoped memory for tpu_custom_call.1']
    #allocation5 [shape = 's32[2]{0}', space=sflag, size = 0x8, scoped, tag = 'scoped memory for tpu_custom_call.1']
    #allocation6 [shape = 'u8[8192]{0}', space=vmem, size = 0x2000, scoped, tag = 'output window, operand 0']
    %8 = vsyncpa [#allocation4], 0
    %s9 = scalar_lea.sflag [#allocation4], 1
    %10 = vsyncpa %s9, 0
    %11 = vsyncpa [#allocation5], 0
    %s12 = scalar_lea.sflag [#allocation5], 1
    %13 = vsyncpa %s12, 0
    loop: start=0, step=1, limit=4
    $region2: #{tpu_custom_call.1} parent=1 // loop_pre_header
      _
    $region3: #{tpu_custom_call.1} parent=1 // loop_header
      %s15 = sphi 0, %s19
      %p16 = scmp.ge.s32.totalorder %s15, 4
      %s22 = sphi 0, %s34
      %s23 = sphi 0, %s30
      %s24 = sphi 0, %s22
      %s25 = sphi 0, %s23
      %s26 = sphi 0, %s24
      %s27 = sphi 0, %s25
      %s35 = sphi 0, %s35
      %s37 = sphi 0, %s35
      %s38 = sphi 0, %s37
      %s52 = sphi 0, %s38
      %s60 = sphi 0, %s62
      %s63 = sphi 0, %s60
      %s64 = sphi 0, %s63
      %s80 = sphi 0, %s64
      %s88 = sphi 0, %s90
      %s91 = sphi 0, %s88
      %s92 = sphi 0, %s91
      %s108 = sphi 0, %s92
    $region4: #{tpu_custom_call.1} parent=1 // loop_header_branch
      %18 = sbr.rel (%p16) target = $region8
    $region5: #{tpu_custom_call.1} parent=1 // loop_body
      %s20 = ssub.s32 %s15, 1
      %s21 = ssub.s32 %s15, 2
      %s28 = sadd.s32 1, %s23
      %p29 = scmp.ge.s32.totalorder %s28, 1
      %s30 = scalar_select %p29, 0, %s28
      %s31 = sadd.s32 1, %s22
      %s32 = scalar_select %p29, %s31, %s22
      %p33 = scmp.ge.s32.totalorder %s32, 2
      %s34 = scalar_select %p33, 0, %s32
      %s36 = sadd.s32 %s35, 1
      %p39 = scmp.eq.s32.totalorder %s15, 1
      %p40 = scmp.ne.s32.totalorder %s35, %s37
      %p41 = scmp.eq.s32.totalorder %s15, 0
      %p42 = por %p40, %p41
      %p43 = scmp.ne.s32.totalorder %s35, %s37
      %p44 = scmp.eq.s32.totalorder %s20, 1
      %p45 = por %p43, %p44
      %p46 = scmp.ne.s32.totalorder %s37, %s38
      %p47 = scmp.eq.s32.totalorder %s20, 0
      %p48 = por %p46, %p47
      %p49 = scmp.ne.s32.totalorder %s37, %s38
      %p50 = scmp.eq.s32.totalorder %s21, 1
      %p51 = por %p49, %p50
      %p53 = scmp.ne.s32.totalorder %s38, %s52
      %p54 = scmp.eq.s32.totalorder %s21, 0
      %p55 = por %p53, %p54
      %s56 = ssub.s32 %s22, %s34
      %s57 = ssub.s32 %s23, %s30
      %s58 = sor.u32 %s56, %s57
      %p59 = scmp.eq.s32.totalorder %s58, 0
      %s61 = sadd.s32 %s60, 1
      %s62 = scalar_select %p59, %s60, %s61
      %p65 = pneg %p59
      %p66 = scmp.eq.s32.totalorder %s15, 1
      %p67 = por %p65, %p66
      %p68 = scmp.ne.s32.totalorder %s60, %s63
      %p69 = scmp.eq.s32.totalorder %s15, 0
      %p70 = por %p68, %p69
      %p71 = scmp.ne.s32.totalorder %s60, %s63
      %p72 = scmp.eq.s32.totalorder %s20, 1
      %p73 = por %p71, %p72
      %p74 = scmp.ne.s32.totalorder %s63, %s64
      %p75 = scmp.eq.s32.totalorder %s20, 0
      %p76 = por %p74, %p75
      %p77 = scmp.ne.s32.totalorder %s63, %s64
      %p78 = scmp.eq.s32.totalorder %s21, 1
      %p79 = por %p77, %p78
      %p81 = scmp.ne.s32.totalorder %s64, %s80
      %p82 = scmp.eq.s32.totalorder %s21, 0
      %p83 = por %p81, %p82
      %s84 = ssub.s32 %s22, %s34
      %s85 = ssub.s32 %s23, %s30
      %s86 = sor.u32 %s84, %s85
      %p87 = scmp.eq.s32.totalorder %s86, 0
      %s89 = sadd.s32 %s88, 1
      %s90 = scalar_select %p87, %s88, %s89
      %p93 = pneg %p87
      %p94 = scmp.eq.s32.totalorder %s15, 1
      %p95 = por %p93, %p94
      %p96 = scmp.ne.s32.totalorder %s88, %s91
      %p97 = scmp.eq.s32.totalorder %s15, 0
      %p98 = por %p96, %p97
      %p99 = scmp.ne.s32.totalorder %s88, %s91
      %p100 = scmp.eq.s32.totalorder %s20, 1
      %p101 = por %p99, %p100
      %p102 = scmp.ne.s32.totalorder %s91, %s92
      %p103 = scmp.eq.s32.totalorder %s20, 0
      %p104 = por %p102, %p103
      %p105 = scmp.ne.s32.totalorder %s91, %s92
      %p106 = scmp.eq.s32.totalorder %s21, 1
      %p107 = por %p105, %p106
      %p109 = scmp.ne.s32.totalorder %s92, %s108
      %p110 = scmp.eq.s32.totalorder %s21, 0
      %p111 = por %p109, %p110
      %p112 = scmp.le.s32.totalorder 1, %s15
      %p113 = scmp.lt.s32.totalorder %s15, 3
      %p114 = pnand %p112, %p113
      %p115 = pneg %p114
      // Predicated region
      $region9: #{tpu_custom_call.1} parent=5 // pred_check
        _
      $region10: #{tpu_custom_call.1} parent=5 // pred_check_branch
        %117 = sbr.rel (%p114) target = $region12
      $region11: #{tpu_custom_call.1} parent=5 // pred_region
        %s118 = ssub.s32 %s15, 1
        // Predicated region
        $region13: #{tpu_custom_call.1} parent=11 // pred_check
          %p119 = pneg %p48
        $region14: #{tpu_custom_call.1} parent=11 // pred_check_branch
          %121 = sbr.rel (%p119) target = $region16
        $region15: #{tpu_custom_call.1} parent=11 // pred_region
          _
        $region16: #{tpu_custom_call.1} parent=11 // pred_fallthru
          _
      $region12: #{tpu_custom_call.1} parent=5 // pred_fallthru
        _
      %p122 = scmp.lt.s32.totalorder %s15, 2
      // Predicated region
      $region17: #{tpu_custom_call.1} parent=5 // pred_check
        %p123 = pneg %p122
      $region18: #{tpu_custom_call.1} parent=5 // pred_check_branch
        %125 = sbr.rel (%p123) target = $region20
      $region19: #{tpu_custom_call.1} parent=5 // pred_region
        // Predicated region
        $region21: #{tpu_custom_call.1} parent=19 // pred_check
          %p126 = pneg %p70
        $region22: #{tpu_custom_call.1} parent=19 // pred_check_branch
          %128 = sbr.rel (%p126) target = $region24
        $region23: #{tpu_custom_call.1} parent=19 // pred_region
          %s129 = sand.u32 %s60, 1
          %s130 = scalar_lea.sflag [#allocation4], %s129
          %s131 = sand.u32 %s60, 1
          %s132 = smul.addr %s131, 8
          %s133 = scalar_lea.vmem [#allocation3], %s132
          %s134 = smul.u32 2, %s23
          %136 = vsyncadd %s130, 0
          %s137 = smul.addr %s22, 2
          %s138 = sadd.s32 %s134, %s137
          %s139 = smul.addr %s138, 4
          %s140 = scalar_lea.hbm %s1, %s139
          %s142 = sshll.u32 %s140, 4
          %s143 = int_to_ptr.hbm [resolvable:$true] %s142
          %s144 = sshll.u32 %s133, 4
          %s145 = int_to_ptr.vmem [resolvable:$true] %s144
          %147 = dma.hbm_to_vmem [thread:$0]  %s143, 128, %s145, %s130
        $region24: #{tpu_custom_call.1} parent=19 // pred_fallthru
          _
      $region20: #{tpu_custom_call.1} parent=5 // pred_fallthru
        _
      %p148 = scmp.le.s32.totalorder 1, %s15
      %p149 = scmp.lt.s32.totalorder %s15, 3
      %p150 = pnand %p148, %p149
      %p151 = pneg %p150
      // Predicated region
      $region25: #{tpu_custom_call.1} parent=5 // pred_check
        _
      $region26: #{tpu_custom_call.1} parent=5 // pred_check_branch
        %153 = sbr.rel (%p150) target = $region28
      $region27: #{tpu_custom_call.1} parent=5 // pred_region
        %s154 = ssub.s32 %s15, 1
        %s155 = sand.u32 %s63, 1
        %s156 = scalar_lea.sflag [#allocation4], %s155
        %s157 = sand.u32 %s63, 1
        %s158 = smul.addr %s157, 8
        %s159 = scalar_lea.vmem [#allocation3], %s158
        // Predicated region
        $region29: #{tpu_custom_call.1} parent=27 // pred_check
          %p160 = pneg %p76
        $region30: #{tpu_custom_call.1} parent=27 // pred_check_branch
          %162 = sbr.rel (%p160) target = $region32
        $region31: #{tpu_custom_call.1} parent=27 // pred_region
          %164 = dma.done %s156, 128
        $region32: #{tpu_custom_call.1} parent=27 // pred_fallthru
          _
        %p165 = pneg %p48
        %p166 = pneg %p45
        %s167 = sand.u32 %s63, 1
        %s168 = scalar_lea.sflag [#allocation4], %s167
        %s169 = sand.u32 %s63, 1
        %s170 = smul.addr %s169, 8
        %s171 = scalar_lea.vmem [#allocation3], %s170
        %p172 = pneg %p76
        %p173 = pneg %p73
        %p174 = pneg %p104
        %p175 = pneg %p101
        %s176 = sand.u32 %s91, 1
        %s177 = scalar_lea.sflag [#allocation5], %s176
        %s178 = sand.u32 %s91, 1
        %s179 = smul.addr %s178, 8
        %s180 = scalar_lea.vmem [#allocation6], %s179
        %s181 = smul.u32 2, %s25
        %s182 = smul.u32 2, %s25
        %v183 = vld [vmem:[%s159] sm:$0xff]
        %185 = vst [vmem:[#allocation1] ss:$2 sm:$0xff] %v183
        %v186 = vld.sshfl [vmem:[#allocation1] sm:$0xff pattern:$0x75316420]
        %v187 = vld.sshfl [vmem:[#allocation1 + $0x8] sm:$0xff pattern:$0x75316420]
        %vm190 = vcmask 1043456
        %v191 = vsel %vm190, %v186, -inf
        %v192 = vrot.slane %v191, 4
        %v193 = vmax.f32 %v191, %v192
        %v194 = vrot.slane %v193, 2
        %v195 = vmax.f32 %v193, %v194
        %v196 = vrot.slane %v195, 1
        %v197 = vmax.f32 %v195, %v196
        %v198 = vsel %vm190, %v187, -inf
        %v199 = vrot.slane %v198, 4
        %v200 = vmax.f32 %v198, %v199
        %v201 = vrot.slane %v200, 2
        %v202 = vmax.f32 %v200, %v201
        %v203 = vrot.slane %v202, 1
        %v204 = vmax.f32 %v202, %v203
        %v207 = vrot.slane %v204, 4
        %v208 = vsel %vm190, %v197, %v207
        %v210 = vsub.f32 %v183, %v208
        %v211 = vmul.f32 %v210, 1.442695
        %v212 = vpow.pop %v211
        %214 = vst [vmem:[#allocation1] ss:$2 sm:$0xff] %v212
        %v215 = vld.sshfl [vmem:[#allocation1] sm:$0xff pattern:$0x75316420]
        %v216 = vld.sshfl [vmem:[#allocation1 + $0x8] sm:$0xff pattern:$0x75316420]
        %v219 = vsel %vm190, %v215, 0.0
        %v220 = vrot.slane %v219, 4
        %v221 = vadd.f32 %v219, %v220
        %v222 = vrot.slane %v221, 2
        %v223 = vadd.f32 %v221, %v222
        %v224 = vrot.slane %v223, 1
        %v225 = vadd.f32 %v223, %v224
        %v226 = vsel %vm190, %v216, 0.0
        %v227 = vrot.slane %v226, 4
        %v228 = vadd.f32 %v226, %v227
        %v229 = vrot.slane %v228, 2
        %v230 = vadd.f32 %v228, %v229
        %v231 = vrot.slane %v230, 1
        %v232 = vadd.f32 %v230, %v231
        %s233 = sld [smem:[#allocation2]]
        %v234 = vstv %s233
        %v235 = vrcp.pop %v225
        %v236 = vmul.f32 %v225, %v235
        %v237 = vsub.f32 1.0, %v236
        %v238 = vmul.f32 %v235, %v237
        %v239 = vadd.f32 %v235, %v238
        %vm240 = vweird.f32 %v225
        %vm241 = vweird.f32 %v235
        %vm242 = vmor %vm240, %vm241
        %v243 = vsel %vm242, %v235, %v239
        %v244 = vand.u32 2147483647, %v225
        %vm245 = vcmp.eq.f32.partialorder %v244, 8.507059e+37
        %v246 = vand.u32 %v225, 2147483648
        %v247 = vor.u32 1.1754944e-38, %v246
        %v248 = vsel %vm245, %v247, %v243
        %v249 = vmul.f32 %v234, %v248
        %v250 = vrcp.pop %v232
        %v251 = vmul.f32 %v232, %v250
        %v252 = vsub.f32 1.0, %v251
        %v253 = vmul.f32 %v250, %v252
        %v254 = vadd.f32 %v250, %v253
        %vm255 = vweird.f32 %v232
        %vm256 = vweird.f32 %v250
        %vm257 = vmor %vm255, %vm256
        %v258 = vsel %vm257, %v250, %v254
        %v259 = vand.u32 2147483647, %v232
        %vm260 = vcmp.eq.f32.partialorder %v259, 8.507059e+37
        %v261 = vand.u32 %v232, 2147483648
        %v262 = vor.u32 1.1754944e-38, %v261
        %v263 = vsel %vm260, %v262, %v258
        %v264 = vmul.f32 %v234, %v263
        %v267 = vrot.slane %v264, 4
        %v268 = vsel %vm190, %v249, %v267
        %v270 = vmul.f32 %v212, %v268
        %271 = vst [vmem:[%s180] sm:$0xff] %v270
        %s272 = sand.u32 %s91, 1
        %s273 = scalar_lea.sflag [#allocation5], %s272
        %s274 = sand.u32 %s91, 1
        %s275 = smul.addr %s274, 8
        %s276 = scalar_lea.vmem [#allocation6], %s275
        // Predicated region
        $region33: #{tpu_custom_call.1} parent=27 // pred_check
          %p277 = pneg %p101
        $region34: #{tpu_custom_call.1} parent=27 // pred_check_branch
          %279 = sbr.rel (%p277) target = $region36
        $region35: #{tpu_custom_call.1} parent=27 // pred_region
          %s280 = smul.u32 2, %s25
          %282 = vsyncadd %s273, 0
          %s283 = smul.addr %s24, 2
          %s284 = sadd.s32 %s280, %s283
          %s285 = smul.addr %s284, 4
          %s286 = scalar_lea.hbm %s2, %s285
          %s288 = sshll.u32 %s276, 4
          %s289 = int_to_ptr.vmem [resolvable:$true] %s288
          %s290 = sshll.u32 %s286, 4
          %s291 = int_to_ptr.hbm [resolvable:$true] %s290
          %293 = dma.vmem_to_hbm [thread:$0]  %s289, 128, %s291, %s273
        $region36: #{tpu_custom_call.1} parent=27 // pred_fallthru
          _
      $region28: #{tpu_custom_call.1} parent=5 // pred_fallthru
        _
      %p294 = scmp.le.s32.totalorder 2, %s15
      // Predicated region
      $region37: #{tpu_custom_call.1} parent=5 // pred_check
        %p295 = pneg %p294
      $region38: #{tpu_custom_call.1} parent=5 // pred_check_branch
        %297 = sbr.rel (%p295) target = $region40
      $region39: #{tpu_custom_call.1} parent=5 // pred_region
        %s298 = ssub.s32 %s15, 2
        // Predicated region
        $region41: #{tpu_custom_call.1} parent=39 // pred_check
          %p299 = pneg %p107
        $region42: #{tpu_custom_call.1} parent=39 // pred_check_branch
          %301 = sbr.rel (%p299) target = $region44
        $region43: #{tpu_custom_call.1} parent=39 // pred_region
          %s302 = sand.u32 %s92, 1
          %s303 = scalar_lea.sflag [#allocation5], %s302
          %s304 = sand.u32 %s92, 1
          %s305 = smul.addr %s304, 8
          %s306 = scalar_lea.vmem [#allocation6], %s305
          %308 = dma.done %s303, 128
        $region44: #{tpu_custom_call.1} parent=39 // pred_fallthru
          _
      $region40: #{tpu_custom_call.1} parent=5 // pred_fallthru
        _
    $region6: #{tpu_custom_call.1} parent=1 // loop_footer
      %s19 = sadd.s32 1, %s15
    $region7: #{tpu_custom_call.1} parent=1 // loop_footer_branch
      %14 = sbr.rel target = $region3
    $region8: #{tpu_custom_call.1} parent=1 // loop_exit
      _
    %309 = vsyncpa [#allocation4], 1
    %s310 = scalar_lea.sflag [#allocation4], 1
    %311 = vsyncpa %s310, 1
    %312 = vsyncpa [#allocation5], 1
    %s313 = scalar_lea.sflag [#allocation5], 1
    %314 = vsyncpa %s313, 1

</llo_original>
